<compile_context>
chip_gen: v7x
topology: tpu7x:2x2x1
jax: 0.10.0
libtpu: 0.0.40
codegen_flags: <defaults>
</compile_context>

<pallas_src>
import jax
import jax.numpy as jnp
from jax.experimental import pallas as pl
from jax.experimental.pallas import tpu as pltpu

HEAD_LANES = 128  # fused (mean | value) head padded to one full lane group


def _round_up(x, m):
    return ((x + m - 1) // m) * m


def _choose_tile_b(batch):
    """Batch-tile (rows per grid step).  batch is a Python int at trace time."""
    if batch <= 64:
        # tiny / latency-bound: 8-row sublane quantum, no big padding.
        return _round_up(batch, 8)
    if batch <= 1024:
        # split into >= 2 parallel steps so both v7x TensorCores get work;
        # 128-row multiples keep MXU tiles aligned (full height on v5e).
        return _round_up(-(-batch // 2), 128)
    # large batch: 256-multiple tiles fill the v6e/v7x 256x256 MXU and
    # amortize per-grid-step overhead; ~0.5 MiB/tile, far below VMEM limits.
    return 512


def actor_critic_kernel(x_ref, w1_ref, b1_ref, w2_ref, b2_ref,
                        wh_ref, bh_ref, out_ref):
    # Shared trunk: Linear(state_dim,256) -> ReLU -> Linear(256,256) -> ReLU.
    # bf16 MXU operands, f32 accumulation; bias + ReLU in f32.
    x = x_ref[...].astype(jnp.bfloat16)
    h1 = jnp.dot(x, w1_ref[...], preferred_element_type=jnp.float32)
    h1 = jnp.maximum(h1 + b1_ref[...], 0.0).astype(jnp.bfloat16)
    h2 = jnp.dot(h1, w2_ref[...], preferred_element_type=jnp.float32)
    h2 = jnp.maximum(h2 + b2_ref[...], 0.0).astype(jnp.bfloat16)
    # Fused actor-mean + critic head: single unmasked 128-lane store.
    out_ref[...] = (
        jnp.dot(h2, wh_ref[...], preferred_element_type=jnp.float32) + bh_ref[...]
    )


def prepare_params(torch_params):
    """One-time layout plumbing (hoisted out of the per-step forward path)."""
    w1, b1, w2, b2, wa, ba, log_std, wv, bv = torch_params
    hidden = w1.shape[0]
    action_dim = wa.shape[0]
    head_out = action_dim + 1
    head_pad = _round_up(head_out, HEAD_LANES)

    # Fused head: columns [0:A) = actor_mean, column A = critic, rest zero.
    w_head = jnp.zeros((hidden, head_pad), jnp.float32)
    w_head = w_head.at[:, :action_dim].set(wa.T).at[:, action_dim:head_out].set(wv.T)
    b_head = jnp.zeros((1, head_pad), jnp.float32)
    b_head = b_head.at[0, :action_dim].set(ba).at[0, action_dim:head_out].set(bv)

    return (
        jnp.asarray(w1.T, jnp.bfloat16),          # (state_dim, 256)
        jnp.asarray(b1, jnp.float32).reshape(1, -1),
        jnp.asarray(w2.T, jnp.bfloat16),          # (256, 256)
        jnp.asarray(b2, jnp.float32).reshape(1, -1),
        jnp.asarray(w_head, jnp.bfloat16),        # (256, head_pad)
        b_head,                                    # (1, head_pad) f32
        jnp.asarray(log_std, jnp.float32).reshape(1, -1),
    )


@jax.jit
def actor_critic_forward(state, kparams):
    """Fused ActorCritic forward. Returns (action_mean, action_std, value)."""
    w1, b1, w2, b2, w_head, b_head, log_std = kparams
    B, state_dim = state.shape
    hidden = w1.shape[1]
    head_pad = w_head.shape[1]
    action_dim = log_std.shape[-1]

    tile_b = _choose_tile_b(B)
    nb = pl.cdiv(B, tile_b)
    b_pad = nb * tile_b
    x_pad = state if b_pad == B else jnp.pad(state, ((0, b_pad - B), (0, 0)))

    batch_map = lambda i: (i, 0)   # activation / output blocks follow the grid
    const_map = lambda i: (0, 0)   # weights / biases: DMA'd once, VMEM-resident

    cost = pl.CostEstimate(
        flops=2 * b_pad * (state_dim * hidden + hidden * hidden + hidden * head_pad),
        transcendentals=0,
        bytes_accessed=(x_pad.size * 4
                        + (w1.size + w2.size + w_head.size) * 2
                        + (b1.size + b2.size + b_head.size) * 4
                        + b_pad * head_pad * 4),
    )

    out = pl.pallas_call(
        actor_critic_kernel,
        grid=(nb,),
        in_specs=[
            pl.BlockSpec((tile_b, state_dim), batch_map),   # x tile (streamed)
            pl.BlockSpec((state_dim, hidden), const_map),   # W1
            pl.BlockSpec((1, hidden), const_map),           # b1
            pl.BlockSpec((hidden, hidden), const_map),      # W2
            pl.BlockSpec((1, hidden), const_map),           # b2
            pl.BlockSpec((hidden, head_pad), const_map),    # fused head W
            pl.BlockSpec((1, head_pad), const_map),         # fused head b
        ],
        out_specs=pl.BlockSpec((tile_b, head_pad), batch_map),
        out_shape=jax.ShapeDtypeStruct((b_pad, head_pad), jnp.float32),
        compiler_params=pltpu.CompilerParams(
            dimension_semantics=("parallel",),
        ),
        cost_estimate=cost,
    )(x_pad, w1, b1, w2, b2, w_head, b_head)

    action_mean = out[:B, :action_dim]
    value = out[:B, action_dim:action_dim + 1]
    action_std = jnp.exp(log_std)   # state-independent -> no kernel work needed
    return action_mean, action_std, value


def init_torch_params(key, state_dim, action_dim, hidden=256):
    """Synthetic init mirroring the nn.Module parameters in PyTorch layout."""
    ks = jax.random.split(key, 8)

    def lin(kw, kb, fan_in, fan_out):
        bound = 1.0 / (fan_in ** 0.5)
        w = jax.random.uniform(kw, (fan_out, fan_in), jnp.float32, -bound, bound)
        b = jax.random.uniform(kb, (fan_out,), jnp.float32, -bound, bound)
        return w, b

    w1, b1 = lin(ks[0], ks[1], state_dim, hidden)    # shared[0]
    w2, b2 = lin(ks[2], ks[3], hidden, hidden)       # shared[2]
    wa, ba = lin(ks[4], ks[5], hidden, action_dim)   # actor_mean
    log_std = jnp.zeros((action_dim,), jnp.float32)  # actor_std parameter
    wv, bv = lin(ks[6], ks[7], hidden, 1)            # critic
    return (w1, b1, w2, b2, wa, ba, log_std, wv, bv)


def reference_forward(state, torch_params):
    """Plain-JAX f32 reference of the original PyTorch math."""
    w1, b1, w2, b2, wa, ba, log_std, wv, bv = torch_params
    h1 = jnp.maximum(state @ w1.T + b1, 0.0)
    h2 = jnp.maximum(h1 @ w2.T + b2, 0.0)
    return h2 @ wa.T + ba, jnp.exp(log_std), h2 @ wv.T + bv


if __name__ == "__main__":
    key = jax.random.PRNGKey(0)
    k_param, k_s1, k_s2 = jax.random.split(key, 3)

    state_dim, action_dim = 16, 4
    torch_params = init_torch_params(k_param, state_dim, action_dim)
    kparams = prepare_params(torch_params)   # one-time fusion/transpose/bf16 cast

    # --- tiny latency-bound batch: 8-row tile, no 128-row padding ---------
    state_small = jax.random.normal(k_s1, (8, state_dim), jnp.float32)
    mean, std, value = actor_critic_forward(state_small, kparams)
    jax.block_until_ready((mean, std, value))

    r_mean, r_std, r_value = reference_forward(state_small, torch_params)
    assert mean.shape == (8, action_dim)
    assert std.shape == (1, action_dim)
    assert value.shape == (8, 1)
    # bf16 MXU operands with f32 accumulation -> ~1e-3 abs error vs f32 ref.
    assert jnp.allclose(mean, r_mean, atol=2e-2, rtol=2e-2)
    assert jnp.allclose(value, r_value, atol=2e-2, rtol=2e-2)
    assert jnp.allclose(std, r_std, atol=1e-6)

    # --- mid batch: 2 parallel grid steps (both v7x TCs), pad rows sliced --
    state_mid = jax.random.normal(k_s2, (200, state_dim), jnp.float32)
    mean2, _, value2 = actor_critic_forward(state_mid, kparams)
    jax.block_until_ready((mean2, value2))
    r_mean2, _, r_value2 = reference_forward(state_mid, torch_params)
    assert jnp.allclose(mean2, r_mean2, atol=2e-2, rtol=2e-2)
    assert jnp.allclose(value2, r_value2, atol=2e-2, rtol=2e-2)

    # TODO(synk): torch.distributions.Normal has no array equivalent; we return
    # its parameters (mean, std), which fully determine the distribution.
    print("KERNEL_OK")
</pallas_src>

<mosaic_0001>
module attributes {stable_mosaic.version = 11 : i64} {
  func.func @actor_critic_kernel(%arg0: i32, %arg1: memref<8x16xf32, #tpu.memory_space<vmem>>, %arg2: memref<16x256xbf16, #tpu.memory_space<vmem>>, %arg3: memref<1x256xf32, #tpu.memory_space<vmem>>, %arg4: memref<256x256xbf16, #tpu.memory_space<vmem>>, %arg5: memref<1x256xf32, #tpu.memory_space<vmem>>, %arg6: memref<256x128xbf16, #tpu.memory_space<vmem>>, %arg7: memref<1x128xf32, #tpu.memory_space<vmem>>, %arg8: memref<8x128xf32, #tpu.memory_space<vmem>>) attributes {dimension_semantics = [#tpu.dimension_semantics<parallel>], iteration_bounds = array<i64: 1>, scalar_prefetch = 0 : i64, scratch_operands = 0 : i64, tpu.core_type = #tpu.core_type<tc>, window_params = [{transform_indices = @transform_0, window_bounds = array<i64: 8, 16>}, {pipeline_mode = #tpu.pipeline_mode<synchronous>, transform_indices = @transform_1, window_bounds = array<i64: 16, 256>}, {pipeline_mode = #tpu.pipeline_mode<synchronous>, transform_indices = @transform_2, window_bounds = array<i64: 1, 256>}, {pipeline_mode = #tpu.pipeline_mode<synchronous>, transform_indices = @transform_3, window_bounds = array<i64: 256, 256>}, {pipeline_mode = #tpu.pipeline_mode<synchronous>, transform_indices = @transform_4, window_bounds = array<i64: 1, 256>}, {pipeline_mode = #tpu.pipeline_mode<synchronous>, transform_indices = @transform_5, window_bounds = array<i64: 256, 128>}, {pipeline_mode = #tpu.pipeline_mode<synchronous>, transform_indices = @transform_6, window_bounds = array<i64: 1, 128>}, {transform_indices = @transform_7, window_bounds = array<i64: 8, 128>}]} {
    %c0 = arith.constant 0 : index
    %c0_0 = arith.constant 0 : index
    %0 = vector.load %arg1[%c0, %c0_0] : memref<8x16xf32, #tpu.memory_space<vmem>>, vector<8x16xf32>
    %1 = arith.truncf %0 : vector<8x16xf32> to vector<8x16xbf16>
    %c0_1 = arith.constant 0 : index
    %c0_2 = arith.constant 0 : index
    %2 = vector.load %arg2[%c0_1, %c0_2] : memref<16x256xbf16, #tpu.memory_space<vmem>>, vector<16x256xbf16>
    %cst = arith.constant dense<0.000000e+00> : vector<8x256xf32>
    %3 = tpu.matmul %1, %2, %cst {dimension_numbers = #tpu.dot_dimension_numbers<[1], [0], [0], [1], [0, 0, 1, 1], [], []>} : vector<8x16xbf16>, vector<16x256xbf16>, vector<8x256xf32> -> vector<8x256xf32>
    %c0_3 = arith.constant 0 : index
    %c0_4 = arith.constant 0 : index
    %4 = vector.load %arg3[%c0_3, %c0_4] : memref<1x256xf32, #tpu.memory_space<vmem>>, vector<1x256xf32>
    %5 = vector.broadcast %4 : vector<1x256xf32> to vector<8x256xf32>
    %6 = arith.addf %3, %5 : vector<8x256xf32>
    %cst_5 = arith.constant 0.000000e+00 : f32
    %7 = vector.broadcast %cst_5 : f32 to vector<8x256xf32>
    %8 = arith.maximumf %6, %7 : vector<8x256xf32>
    %9 = arith.truncf %8 : vector<8x256xf32> to vector<8x256xbf16>
    %c0_6 = arith.constant 0 : index
    %c0_7 = arith.constant 0 : index
    %10 = vector.load %arg4[%c0_6, %c0_7] : memref<256x256xbf16, #tpu.memory_space<vmem>>, vector<256x256xbf16>
    %cst_8 = arith.constant dense<0.000000e+00> : vector<8x256xf32>
    %11 = tpu.matmul %9, %10, %cst_8 {dimension_numbers = #tpu.dot_dimension_numbers<[1], [0], [0], [1], [0, 0, 1, 1], [], []>} : vector<8x256xbf16>, vector<256x256xbf16>, vector<8x256xf32> -> vector<8x256xf32>
    %c0_9 = arith.constant 0 : index
    %c0_10 = arith.constant 0 : index
    %12 = vector.load %arg5[%c0_9, %c0_10] : memref<1x256xf32, #tpu.memory_space<vmem>>, vector<1x256xf32>
    %13 = vector.broadcast %12 : vector<1x256xf32> to vector<8x256xf32>
    %14 = arith.addf %11, %13 : vector<8x256xf32>
    %cst_11 = arith.constant 0.000000e+00 : f32
    %15 = vector.broadcast %cst_11 : f32 to vector<8x256xf32>
    %16 = arith.maximumf %14, %15 : vector<8x256xf32>
    %17 = arith.truncf %16 : vector<8x256xf32> to vector<8x256xbf16>
    %c0_12 = arith.constant 0 : index
    %c0_13 = arith.constant 0 : index
    %18 = vector.load %arg6[%c0_12, %c0_13] : memref<256x128xbf16, #tpu.memory_space<vmem>>, vector<256x128xbf16>
    %cst_14 = arith.constant dense<0.000000e+00> : vector<8x128xf32>
    %19 = tpu.matmul %17, %18, %cst_14 {dimension_numbers = #tpu.dot_dimension_numbers<[1], [0], [0], [1], [0, 0, 1, 1], [], []>} : vector<8x256xbf16>, vector<256x128xbf16>, vector<8x128xf32> -> vector<8x128xf32>
    %c0_15 = arith.constant 0 : index
    %c0_16 = arith.constant 0 : index
    %20 = vector.load %arg7[%c0_15, %c0_16] : memref<1x128xf32, #tpu.memory_space<vmem>>, vector<1x128xf32>
    %21 = vector.broadcast %20 : vector<1x128xf32> to vector<8x128xf32>
    %22 = arith.addf %19, %21 : vector<8x128xf32>
    %c0_17 = arith.constant 0 : index
    %c0_18 = arith.constant 0 : index
    %23 = vector.load %arg8[%c0_17, %c0_18] : memref<8x128xf32, #tpu.memory_space<vmem>>, vector<8x128xf32>
    tpu.vector_store %arg8[%c0_17, %c0_18], %22 {strides = array<i32>} : memref<8x128xf32, #tpu.memory_space<vmem>>, vector<8x128xf32>,
    return
  }
  func.func @transform_0(%arg0: i32) -> (i32, i32) {
    %c0_i32 = arith.constant 0 : i32
    %c0_i32_0 = arith.constant 0 : i32
    return %arg0, %c0_i32 : i32, i32
  }
  func.func @transform_1(%arg0: i32) -> (i32, i32) {
    %c0_i32 = arith.constant 0 : i32
    %c0_i32_0 = arith.constant 0 : i32
    %c0_i32_1 = arith.constant 0 : i32
    return %c0_i32, %c0_i32_0 : i32, i32
  }
  func.func @transform_2(%arg0: i32) -> (i32, i32) {
    %c0_i32 = arith.constant 0 : i32
    %c0_i32_0 = arith.constant 0 : i32
    %c0_i32_1 = arith.constant 0 : i32
    return %c0_i32, %c0_i32_0 : i32, i32
  }
  func.func @transform_3(%arg0: i32) -> (i32, i32) {
    %c0_i32 = arith.constant 0 : i32
    %c0_i32_0 = arith.constant 0 : i32
    %c0_i32_1 = arith.constant 0 : i32
    return %c0_i32, %c0_i32_0 : i32, i32
  }
  func.func @transform_4(%arg0: i32) -> (i32, i32) {
    %c0_i32 = arith.constant 0 : i32
    %c0_i32_0 = arith.constant 0 : i32
    %c0_i32_1 = arith.constant 0 : i32
    return %c0_i32, %c0_i32_0 : i32, i32
  }
  func.func @transform_5(%arg0: i32) -> (i32, i32) {
    %c0_i32 = arith.constant 0 : i32
    %c0_i32_0 = arith.constant 0 : i32
    %c0_i32_1 = arith.constant 0 : i32
    return %c0_i32, %c0_i32_0 : i32, i32
  }
  func.func @transform_6(%arg0: i32) -> (i32, i32) {
    %c0_i32 = arith.constant 0 : i32
    %c0_i32_0 = arith.constant 0 : i32
    %c0_i32_1 = arith.constant 0 : i32
    return %c0_i32, %c0_i32_0 : i32, i32
  }
  func.func @transform_7(%arg0: i32) -> (i32, i32) {
    %c0_i32 = arith.constant 0 : i32
    %c0_i32_0 = arith.constant 0 : i32
    return %arg0, %c0_i32 : i32, i32
  }
}

</mosaic_0001>

<llo_original>
// kernel: actor_critic_forward.1
$region0: #{actor_critic_forward.1}
  #allocation0 [shape = 'u32[]', space=smem, size = 0x4, offset = 0x4, fixed_abs, tag = 'smem constant byte address 0x4 - core index']
  #allocation1 [shape = 'u32[144,128]{1,0:T(1,128)}', space=vmem, size = 0x12000, scoped, tag = 'internal scratch']
  %s0 = inlined_call_operand.hbm [shape: f32[8,16], index: 0, kind: input, shape index: {}]
  %s1 = inlined_call_operand.vmem [shape: bf16[16,256], index: 1, kind: input, shape index: {}]
  %s2 = inlined_call_operand.vmem [shape: f32[1,256], index: 2, kind: input, shape index: {}]
  %s3 = inlined_call_operand.hbm [shape: bf16[256,256], index: 3, kind: input, shape index: {}]
  %s4 = inlined_call_operand.vmem [shape: f32[1,256], index: 4, kind: input, shape index: {}]
  %s5 = inlined_call_operand.hbm [shape: bf16[256,128], index: 5, kind: input, shape index: {}]
  %s6 = inlined_call_operand.vmem [shape: f32[1,128], index: 6, kind: input, shape index: {}]
  %s7 = inlined_call_operand.vmem [shape: f32[8,128], index: 7, kind: output, shape index: {}]
  %s8 = sld [smem:[#allocation0]]
  $region50: #{actor_critic_forward.1} parent=0
    _
  %s10 = ssub.s32 1, %s8
  %s11 = scalar_select 0, %s10, %s8
  $region1: #{actor_critic_forward.1} parent=0
    #allocation2 [shape = 'u8[4096]{0}', space=vmem, size = 0x1000, scoped, tag = 'input window, operand 0, single buffered']
    #allocation3 [shape = 's32[1]{0}', space=sflag, size = 0x4, scoped, tag = 'scoped memory for actor_critic_forward.1']
    #allocation4 [shape = 'u8[131072]{0}', space=vmem, size = 0x20000, scoped, tag = 'input window, operand 3, single buffered']
    #allocation5 [shape = 's32[1]{0}', space=sflag, size = 0x4, scoped, tag = 'scoped memory for actor_critic_forward.1']
    #allocation6 [shape = 'u8[65536]{0}', space=vmem, size = 0x10000, scoped, tag = 'input window, operand 5, single buffered']
    %12 = vsyncpa [#allocation3], 0
    %13 = vsyncpa [#allocation5], 0
    // Predicated region
    $region2: #{actor_critic_forward.1} parent=1 // pred_check
      _
    $region3: #{actor_critic_forward.1} parent=1 // pred_check_branch
      %15 = sbr.rel (0) target = $region5
    $region4: #{actor_critic_forward.1} parent=1 // pred_region
      %s17 = ssub.s32 128, 128
      %18 = vsyncadd [#allocation3], %s17
      %s20 = sshll.u32 [#allocation2], 4
      %s21 = int_to_ptr.vmem [resolvable:$true] %s20
      %23 = dma.hbm_to_vmem [thread:$0]  %s0, 128, %s21, [#allocation3]
    $region5: #{actor_critic_forward.1} parent=1 // pred_fallthru
      _
    // Predicated region
    $region6: #{actor_critic_forward.1} parent=1 // pred_check
      _
    $region7: #{actor_critic_forward.1} parent=1 // pred_check_branch
      %25 = sbr.rel (0) target = $region9
    $region8: #{actor_critic_forward.1} parent=1 // pred_region
      _
    $region9: #{actor_critic_forward.1} parent=1 // pred_fallthru
      _
    // Predicated region
    $region10: #{actor_critic_forward.1} parent=1 // pred_check
      _
    $region11: #{actor_critic_forward.1} parent=1 // pred_check_branch
      %27 = sbr.rel (0) target = $region13
    $region12: #{actor_critic_forward.1} parent=1 // pred_region
      _
    $region13: #{actor_critic_forward.1} parent=1 // pred_fallthru
      _
    // Predicated region
    $region14: #{actor_critic_forward.1} parent=1 // pred_check
      _
    $region15: #{actor_critic_forward.1} parent=1 // pred_check_branch
      %29 = sbr.rel (0) target = $region17
    $region16: #{actor_critic_forward.1} parent=1 // pred_region
      %s31 = ssub.s32 4096, 4096
      %32 = vsyncadd [#allocation5], %s31
      %s33 = sshll.u32 [#allocation4], 4
      %s34 = int_to_ptr.vmem [resolvable:$true] %s33
      %39 = dma.hbm_to_vmem [thread:$0]  %s3, 4096, %s34, [#allocation5], 128, 128, 8
    $region17: #{actor_critic_forward.1} parent=1 // pred_fallthru
      _
    // Predicated region
    $region18: #{actor_critic_forward.1} parent=1 // pred_check
      _
    $region19: #{actor_critic_forward.1} parent=1 // pred_check_branch
      %41 = sbr.rel (0) target = $region21
    $region20: #{actor_critic_forward.1} parent=1 // pred_region
      _
    $region21: #{actor_critic_forward.1} parent=1 // pred_fallthru
      _
    // Predicated region
    $region22: #{actor_critic_forward.1} parent=1 // pred_check
      _
    $region23: #{actor_critic_forward.1} parent=1 // pred_check_branch
      %43 = sbr.rel (0) target = $region25
    $region24: #{actor_critic_forward.1} parent=1 // pred_region
      %s45 = ssub.s32 2048, 2048
      %46 = vsyncadd [#allocation5], %s45
      %s47 = sshll.u32 [#allocation6], 4
      %s48 = int_to_ptr.vmem [resolvable:$true] %s47
      %53 = dma.hbm_to_vmem [thread:$0]  %s5, 2048, %s48, [#allocation5], 64, 64, 4
    $region25: #{actor_critic_forward.1} parent=1 // pred_fallthru
      _
    // Predicated region
    $region26: #{actor_critic_forward.1} parent=1 // pred_check
      _
    $region27: #{actor_critic_forward.1} parent=1 // pred_check_branch
      %55 = sbr.rel (0) target = $region29
    $region28: #{actor_critic_forward.1} parent=1 // pred_region
      _
    $region29: #{actor_critic_forward.1} parent=1 // pred_fallthru
      _
    // Predicated region
    $region30: #{actor_critic_forward.1} parent=1 // pred_check
      _
    $region31: #{actor_critic_forward.1} parent=1 // pred_check_branch
      %57 = sbr.rel (0) target = $region33
    $region32: #{actor_critic_forward.1} parent=1 // pred_region
      %58 = dma.done [#allocation3], 128
    $region33: #{actor_critic_forward.1} parent=1 // pred_fallthru
      _
    // Predicated region
    $region34: #{actor_critic_forward.1} parent=1 // pred_check
      _
    $region35: #{actor_critic_forward.1} parent=1 // pred_check_branch
      %60 = sbr.rel (0) target = $region37
    $region36: #{actor_critic_forward.1} parent=1 // pred_region
      %61 = dma.done [#allocation5], 4096
    $region37: #{actor_critic_forward.1} parent=1 // pred_fallthru
      _
    // Predicated region
    $region38: #{actor_critic_forward.1} parent=1 // pred_check
      _
    $region39: #{actor_critic_forward.1} parent=1 // pred_check_branch
      %63 = sbr.rel (0) target = $region41
    $region40: #{actor_critic_forward.1} parent=1 // pred_region
      %64 = dma.done [#allocation5], 2048
    $region41: #{actor_critic_forward.1} parent=1 // pred_fallthru
      _
    %v66 = vld [vmem:[#allocation2] sm:$0xff]
    %v67 = vpack.c.bf16 %v66, %v66
    %v68 = vld [vmem:[%s1] sm:$0xff]
    %v69 = vld [vmem:[%s1 + $0x8] sm:$0xff]
    %v70 = vld [vmem:[%s2] sm:$0x3]
    %v72 = vlaneseq
    %v73 = vshrl.u32 %v72, 7
    %v74 = vsub.s32 0, %v73
    %v75 = vrot.slane %v70, %v74
    %v76 = vlaneseq
    %v77 = vshrl.u32 %v76, 7
    %v78 = vsub.s32 1, %v77
    %v79 = vrot.slane %v70, %v78
    %v84 = vunpack.c.l.b16 %v68
    %v85 = vunpack.c.h.b16 %v68
    %v86 = vunpack.c.l.b16 %v69
    %v87 = vunpack.c.h.b16 %v69
    %v88 = vpack.c.b16 %v86, %v84
    %v89 = vpack.c.b16 %v87, %v85
    %vm92 = vcmask 130048
    %v94 = vsel %vm92, %v67, 0
    %96 = vmatprep.subr.bf16.mxu0 %v89
    %97 = vmatpush1.bf16.msra.mxu0 %v88
    %98 = vmatprep.subr.bf16.mxu0 0
    %99 = vmatpush1.bf16.msra.mxu0 0
    %100 = vmatprep.subr.bf16.mxu0 0
    %101 = vmatpush1.bf16.msra.mxu0 0
    %102 = vmatprep.subr.bf16.mxu0 0
    %103 = vmatpush1.bf16.msra.mxu0 0
    %104 = vmatprep.subr.bf16.mxu0 0
    %105 = vmatpush1.bf16.msra.mxu0 0
    %106 = vmatprep.subr.bf16.mxu0 0
    %107 = vmatpush1.bf16.msra.mxu0 0
    %108 = vmatprep.subr.bf16.mxu0 0
    %109 = vmatpush1.bf16.msra.mxu0 0
    %110 = vmatprep.subr.bf16.mxu0 0
    %111 = vmatpush1.bf16.msra.mxu0 0
    %112 = vmatprep.subr.bf16.mxu0 0
    %113 = vmatpush1.bf16.msra.mxu0 0
    %114 = vmatprep.subr.bf16.mxu0 0
    %115 = vmatpush1.bf16.msra.mxu0 0
    %116 = vmatprep.subr.bf16.mxu0 0
    %117 = vmatpush1.bf16.msra.mxu0 0
    %118 = vmatprep.subr.bf16.mxu0 0
    %119 = vmatpush1.bf16.msra.mxu0 0
    %120 = vmatprep.subr.bf16.mxu0 0
    %121 = vmatpush1.bf16.msra.mxu0 0
    %122 = vmatprep.subr.bf16.mxu0 0
    %123 = vmatpush1.bf16.msra.mxu0 0
    %124 = vmatprep.subr.bf16.mxu0 0
    %125 = vmatpush1.bf16.msra.mxu0 0
    %126 = vmatprep.subr.bf16.mxu0 0
    %127 = vmatpush1.bf16.msra.mxu0 0
    %128 = vmatprep.mubr.bf16.mxu0 0
    %129 = vmatmul.mubr.bf16.gmra.mrb[0].mxu0 %v94
    %v130 = vpop.f32.mrb[0].mxu0
    %v131 = vadd.f32 %v75, %v130
    %v132 = vpop.f32.mrb[0].mxu0
    %v133 = vadd.f32 %v79, %v132
    %v134 = vpop.f32.mrb[0].mxu0
    %v135 = vpop.f32.mrb[0].mxu0
    %136 = vdwg.mxu0
    %v137 = vmax.f32 %v131, 0.0
    %v138 = vmax.f32 %v133, 0.0
    %v139 = vpack.c.bf16 %v137, %v137
    %v140 = vpack.c.bf16 %v138, %v138
    %v141 = vld [vmem:[#allocation4] sm:$0xff]
    %v142 = vld [vmem:[#allocation4 + $0x8] sm:$0xff]
    %v143 = vld [vmem:[#allocation4 + $0x10] sm:$0xff]
    %v144 = vld [vmem:[#allocation4 + $0x18] sm:$0xff]
    %v145 = vld [vmem:[#allocation4 + $0x20] sm:$0xff]
    %v146 = vld [vmem:[#allocation4 + $0x28] sm:$0xff]
    %v147 = vld [vmem:[#allocation4 + $0x30] sm:$0xff]
    %v148 = vld [vmem:[#allocation4 + $0x38] sm:$0xff]
    %v149 = vld [vmem:[#allocation4 + $0x40] sm:$0xff]
    %v150 = vld [vmem:[#allocation4 + $0x48] sm:$0xff]
    %v151 = vld [vmem:[#allocation4 + $0x50] sm:$0xff]
    %v152 = vld [vmem:[#allocation4 + $0x58] sm:$0xff]
    %v153 = vld [vmem:[#allocation4 + $0x60] sm:$0xff]
    %v154 = vld [vmem:[#allocation4 + $0x68] sm:$0xff]
    %v155 = vld [vmem:[#allocation4 + $0x70] sm:$0xff]
    %v156 = vld [vmem:[#allocation4 + $0x78] sm:$0xff]
    %v157 = vld [vmem:[#allocation4 + $0x80] sm:$0xff]
    %v158 = vld [vmem:[#allocation4 + $0x88] sm:$0xff]
    %v159 = vld [vmem:[#allocation4 + $0x90] sm:$0xff]
    %v160 = vld [vmem:[#allocation4 + $0x98] sm:$0xff]
    %v161 = vld [vmem:[#allocation4 + $0xa0] sm:$0xff]
    %v162 = vld [vmem:[#allocation4 + $0xa8] sm:$0xff]
    %v163 = vld [vmem:[#allocation4 + $0xb0] sm:$0xff]
    %v164 = vld [vmem:[#allocation4 + $0xb8] sm:$0xff]
    %v165 = vld [vmem:[#allocation4 + $0xc0] sm:$0xff]
    %v166 = vld [vmem:[#allocation4 + $0xc8] sm:$0xff]
    %v167 = vld [vmem:[#allocation4 + $0xd0] sm:$0xff]
    %v168 = vld [vmem:[#allocation4 + $0xd8] sm:$0xff]
    %v169 = vld [vmem:[#allocation4 + $0xe0] sm:$0xff]
    %v170 = vld [vmem:[#allocation4 + $0xe8] sm:$0xff]
    %v171 = vld [vmem:[#allocation4 + $0xf0] sm:$0xff]
    %v172 = vld [vmem:[#allocation4 + $0xf8] sm:$0xff]
    %v173 = vld [vmem:[%s4] sm:$0x3]
    %v175 = vlaneseq
    %v176 = vshrl.u32 %v175, 7
    %v177 = vsub.s32 0, %v176
    %v178 = vrot.slane %v173, %v177
    %v179 = vlaneseq
    %v180 = vshrl.u32 %v179, 7
    %v181 = vsub.s32 1, %v180
    %v182 = vrot.slane %v173, %v181
    %v217 = vunpack.c.l.b16 %v141
    %v218 = vunpack.c.h.b16 %v141
    %v219 = vunpack.c.l.b16 %v142
    %v220 = vunpack.c.h.b16 %v142
    %v221 = vunpack.c.l.b16 %v143
    %v222 = vunpack.c.h.b16 %v143
    %v223 = vunpack.c.l.b16 %v144
    %v224 = vunpack.c.h.b16 %v144
    %v225 = vunpack.c.l.b16 %v145
    %v226 = vunpack.c.h.b16 %v145
    %v227 = vunpack.c.l.b16 %v146
    %v228 = vunpack.c.h.b16 %v146
    %v229 = vunpack.c.l.b16 %v147
    %v230 = vunpack.c.h.b16 %v147
    %v231 = vunpack.c.l.b16 %v148
    %v232 = vunpack.c.h.b16 %v148
    %v233 = vunpack.c.l.b16 %v149
    %v234 = vunpack.c.h.b16 %v149
    %v235 = vunpack.c.l.b16 %v150
    %v236 = vunpack.c.h.b16 %v150
    %v237 = vunpack.c.l.b16 %v151
    %v238 = vunpack.c.h.b16 %v151
    %v239 = vunpack.c.l.b16 %v152
    %v240 = vunpack.c.h.b16 %v152
    %v241 = vunpack.c.l.b16 %v153
    %v242 = vunpack.c.h.b16 %v153
    %v243 = vunpack.c.l.b16 %v154
    %v244 = vunpack.c.h.b16 %v154
    %v245 = vunpack.c.l.b16 %v155
    %v246 = vunpack.c.h.b16 %v155
    %v247 = vunpack.c.l.b16 %v156
    %v248 = vunpack.c.h.b16 %v156
    %v249 = vunpack.c.l.b16 %v157
    %v250 = vunpack.c.h.b16 %v157
    %v251 = vunpack.c.l.b16 %v158
    %v252 = vunpack.c.h.b16 %v158
    %v253 = vunpack.c.l.b16 %v159
    %v254 = vunpack.c.h.b16 %v159
    %v255 = vunpack.c.l.b16 %v160
    %v256 = vunpack.c.h.b16 %v160
    %v257 = vunpack.c.l.b16 %v161
    %v258 = vunpack.c.h.b16 %v161
    %v259 = vunpack.c.l.b16 %v162
    %v260 = vunpack.c.h.b16 %v162
    %v261 = vunpack.c.l.b16 %v163
    %v262 = vunpack.c.h.b16 %v163
    %v263 = vunpack.c.l.b16 %v164
    %v264 = vunpack.c.h.b16 %v164
    %v265 = vunpack.c.l.b16 %v165
    %v266 = vunpack.c.h.b16 %v165
    %v267 = vunpack.c.l.b16 %v166
    %v268 = vunpack.c.h.b16 %v166
    %v269 = vunpack.c.l.b16 %v167
    %v270 = vunpack.c.h.b16 %v167
    %v271 = vunpack.c.l.b16 %v168
    %v272 = vunpack.c.h.b16 %v168
    %v273 = vunpack.c.l.b16 %v169
    %v274 = vunpack.c.h.b16 %v169
    %v275 = vunpack.c.l.b16 %v170
    %v276 = vunpack.c.h.b16 %v170
    %v277 = vunpack.c.l.b16 %v171
    %v278 = vunpack.c.h.b16 %v171
    %v279 = vunpack.c.l.b16 %v172
    %v280 = vunpack.c.h.b16 %v172
    %v281 = vpack.c.b16 %v219, %v217
    %v282 = vpack.c.b16 %v220, %v218
    %v283 = vpack.c.b16 %v223, %v221
    %v284 = vpack.c.b16 %v224, %v222
    %v285 = vpack.c.b16 %v227, %v225
    %v286 = vpack.c.b16 %v228, %v226
    %v287 = vpack.c.b16 %v231, %v229
    %v288 = vpack.c.b16 %v232, %v230
    %v289 = vpack.c.b16 %v235, %v233
    %v290 = vpack.c.b16 %v236, %v234
    %v291 = vpack.c.b16 %v239, %v237
    %v292 = vpack.c.b16 %v240, %v238
    %v293 = vpack.c.b16 %v243, %v241
    %v294 = vpack.c.b16 %v244, %v242
    %v295 = vpack.c.b16 %v247, %v245
    %v296 = vpack.c.b16 %v248, %v246
    %v297 = vpack.c.b16 %v251, %v249
    %v298 = vpack.c.b16 %v252, %v250
    %v299 = vpack.c.b16 %v255, %v253
    %v300 = vpack.c.b16 %v256, %v254
    %v301 = vpack.c.b16 %v259, %v257
    %v302 = vpack.c.b16 %v260, %v258
    %v303 = vpack.c.b16 %v263, %v261
    %v304 = vpack.c.b16 %v264, %v262
    %v305 = vpack.c.b16 %v267, %v265
    %v306 = vpack.c.b16 %v268, %v266
    %v307 = vpack.c.b16 %v271, %v269
    %v308 = vpack.c.b16 %v272, %v270
    %v309 = vpack.c.b16 %v275, %v273
    %v310 = vpack.c.b16 %v276, %v274
    %v311 = vpack.c.b16 %v279, %v277
    %v312 = vpack.c.b16 %v280, %v278
    %345 = vmatprep.subr.bf16.mxu0 %v282
    %346 = vmatpush1.bf16.msra.mxu0 %v281
    %347 = vmatprep.subr.bf16.mxu0 %v284
    %348 = vmatpush1.bf16.msra.mxu0 %v283
    %349 = vmatprep.subr.bf16.mxu0 %v286
    %350 = vmatpush1.bf16.msra.mxu0 %v285
    %351 = vmatprep.subr.bf16.mxu0 %v288
    %352 = vmatpush1.bf16.msra.mxu0 %v287
    %353 = vmatprep.subr.bf16.mxu0 %v290
    %354 = vmatpush1.bf16.msra.mxu0 %v289
    %355 = vmatprep.subr.bf16.mxu0 %v292
    %356 = vmatpush1.bf16.msra.mxu0 %v291
    %357 = vmatprep.subr.bf16.mxu0 %v294
    %358 = vmatpush1.bf16.msra.mxu0 %v293
    %359 = vmatprep.subr.bf16.mxu0 %v296
    %360 = vmatpush1.bf16.msra.mxu0 %v295
    %361 = vmatprep.subr.bf16.mxu0 %v298
    %362 = vmatpush1.bf16.msra.mxu0 %v297
    %363 = vmatprep.subr.bf16.mxu0 %v300
    %364 = vmatpush1.bf16.msra.mxu0 %v299
    %365 = vmatprep.subr.bf16.mxu0 %v302
    %366 = vmatpush1.bf16.msra.mxu0 %v301
    %367 = vmatprep.subr.bf16.mxu0 %v304
    %368 = vmatpush1.bf16.msra.mxu0 %v303
    %369 = vmatprep.subr.bf16.mxu0 %v306
    %370 = vmatpush1.bf16.msra.mxu0 %v305
    %371 = vmatprep.subr.bf16.mxu0 %v308
    %372 = vmatpush1.bf16.msra.mxu0 %v307
    %373 = vmatprep.subr.bf16.mxu0 %v310
    %374 = vmatpush1.bf16.msra.mxu0 %v309
    %375 = vmatprep.subr.bf16.mxu0 %v312
    %376 = vmatpush1.bf16.msra.mxu0 %v311
    %377 = vmatprep.mubr.bf16.mxu0 %v140
    %378 = vmatmul.mubr.bf16.gmra.mrb[0].mxu0 %v139
    %v379 = vpop.f32.mrb[0].mxu0
    %v380 = vadd.f32 %v178, %v379
    %v381 = vpop.f32.mrb[0].mxu0
    %v382 = vadd.f32 %v182, %v381
    %v383 = vpop.f32.mrb[0].mxu0
    %v384 = vpop.f32.mrb[0].mxu0
    %385 = vdwg.mxu0
    %v386 = vmax.f32 %v380, 0.0
    %v387 = vmax.f32 %v382, 0.0
    %v388 = vpack.c.bf16 %v386, %v386
    %v389 = vpack.c.bf16 %v387, %v387
    %v390 = vld [vmem:[#allocation6] sm:$0xf]
    %v391 = vld [vmem:[#allocation6 + $0x4] sm:$0xf]
    %v392 = vld [vmem:[#allocation6 + $0x8] sm:$0xf]
    %v393 = vld [vmem:[#allocation6 + $0xc] sm:$0xf]
    %v394 = vld [vmem:[#allocation6 + $0x10] sm:$0xf]
    %v395 = vld [vmem:[#allocation6 + $0x14] sm:$0xf]
    %v396 = vld [vmem:[#allocation6 + $0x18] sm:$0xf]
    %v397 = vld [vmem:[#allocation6 + $0x1c] sm:$0xf]
    %v398 = vld [vmem:[#allocation6 + $0x20] sm:$0xf]
    %v399 = vld [vmem:[#allocation6 + $0x24] sm:$0xf]
    %v400 = vld [vmem:[#allocation6 + $0x28] sm:$0xf]
    %v401 = vld [vmem:[#allocation6 + $0x2c] sm:$0xf]
    %v402 = vld [vmem:[#allocation6 + $0x30] sm:$0xf]
    %v403 = vld [vmem:[#allocation6 + $0x34] sm:$0xf]
    %v404 = vld [vmem:[#allocation6 + $0x38] sm:$0xf]
    %v405 = vld [vmem:[#allocation6 + $0x3c] sm:$0xf]
    %v406 = vld [vmem:[#allocation6 + $0x40] sm:$0xf]
    %v407 = vld [vmem:[#allocation6 + $0x44] sm:$0xf]
    %v408 = vld [vmem:[#allocation6 + $0x48] sm:$0xf]
    %v409 = vld [vmem:[#allocation6 + $0x4c] sm:$0xf]
    %v410 = vld [vmem:[#allocation6 + $0x50] sm:$0xf]
    %v411 = vld [vmem:[#allocation6 + $0x54] sm:$0xf]
    %v412 = vld [vmem:[#allocation6 + $0x58] sm:$0xf]
    %v413 = vld [vmem:[#allocation6 + $0x5c] sm:$0xf]
    %v414 = vld [vmem:[#allocation6 + $0x60] sm:$0xf]
    %v415 = vld [vmem:[#allocation6 + $0x64] sm:$0xf]
    %v416 = vld [vmem:[#allocation6 + $0x68] sm:$0xf]
    %v417 = vld [vmem:[#allocation6 + $0x6c] sm:$0xf]
    %v418 = vld [vmem:[#allocation6 + $0x70] sm:$0xf]
    %v419 = vld [vmem:[#allocation6 + $0x74] sm:$0xf]
    %v420 = vld [vmem:[#allocation6 + $0x78] sm:$0xf]
    %v421 = vld [vmem:[#allocation6 + $0x7c] sm:$0xf]
    %v422 = vld [vmem:[%s6] sm:$0x1]
    %v424 = vlaneseq
    %v425 = vshrl.u32 %v424, 7
    %v426 = vsub.s32 0, %v425
    %v427 = vrot.slane %v422, %v426
    %v461 = vunpack.c.l.b16 %v390
    %v462 = vunpack.c.l.b16 %v391
    %v463 = vunpack.c.l.b16 %v392
    %v464 = vunpack.c.l.b16 %v393
    %v465 = vunpack.c.l.b16 %v394
    %v466 = vunpack.c.l.b16 %v395
    %v467 = vunpack.c.l.b16 %v396
    %v468 = vunpack.c.l.b16 %v397
    %v469 = vunpack.c.l.b16 %v398
    %v470 = vunpack.c.l.b16 %v399
    %v471 = vunpack.c.l.b16 %v400
    %v472 = vunpack.c.l.b16 %v401
    %v473 = vunpack.c.l.b16 %v402
    %v474 = vunpack.c.l.b16 %v403
    %v475 = vunpack.c.l.b16 %v404
    %v476 = vunpack.c.l.b16 %v405
    %v477 = vunpack.c.l.b16 %v406
    %v478 = vunpack.c.l.b16 %v407
    %v479 = vunpack.c.l.b16 %v408
    %v480 = vunpack.c.l.b16 %v409
    %v481 = vunpack.c.l.b16 %v410
    %v482 = vunpack.c.l.b16 %v411
    %v483 = vunpack.c.l.b16 %v412
    %v484 = vunpack.c.l.b16 %v413
    %v485 = vunpack.c.l.b16 %v414
    %v486 = vunpack.c.l.b16 %v415
    %v487 = vunpack.c.l.b16 %v416
    %v488 = vunpack.c.l.b16 %v417
    %v489 = vunpack.c.l.b16 %v418
    %v490 = vunpack.c.l.b16 %v419
    %v491 = vunpack.c.l.b16 %v420
    %v492 = vunpack.c.l.b16 %v421
    %v493 = vpack.c.b16 %v462, %v461
    %v494 = vpack.c.b16 %v464, %v463
    %v495 = vpack.c.b16 %v466, %v465
    %v496 = vpack.c.b16 %v468, %v467
    %v497 = vpack.c.b16 %v470, %v469
    %v498 = vpack.c.b16 %v472, %v471
    %v499 = vpack.c.b16 %v474, %v473
    %v500 = vpack.c.b16 %v476, %v475
    %v501 = vpack.c.b16 %v478, %v477
    %v502 = vpack.c.b16 %v480, %v479
    %v503 = vpack.c.b16 %v482, %v481
    %v504 = vpack.c.b16 %v484, %v483
    %v505 = vpack.c.b16 %v486, %v485
    %v506 = vpack.c.b16 %v488, %v487
    %v507 = vpack.c.b16 %v490, %v489
    %v508 = vpack.c.b16 %v492, %v491
    %525 = vmatprep.subr.bf16.mxu0 0
    %526 = vmatpush1.bf16.msra.mxu0 %v493
    %527 = vmatprep.subr.bf16.mxu0 0
    %528 = vmatpush1.bf16.msra.mxu0 %v494
    %529 = vmatprep.subr.bf16.mxu0 0
    %530 = vmatpush1.bf16.msra.mxu0 %v495
    %531 = vmatprep.subr.bf16.mxu0 0
    %532 = vmatpush1.bf16.msra.mxu0 %v496
    %533 = vmatprep.subr.bf16.mxu0 0
    %534 = vmatpush1.bf16.msra.mxu0 %v497
    %535 = vmatprep.subr.bf16.mxu0 0
    %536 = vmatpush1.bf16.msra.mxu0 %v498
    %537 = vmatprep.subr.bf16.mxu0 0
    %538 = vmatpush1.bf16.msra.mxu0 %v499
    %539 = vmatprep.subr.bf16.mxu0 0
    %540 = vmatpush1.bf16.msra.mxu0 %v500
    %541 = vmatprep.subr.bf16.mxu0 0
    %542 = vmatpush1.bf16.msra.mxu0 %v501
    %543 = vmatprep.subr.bf16.mxu0 0
    %544 = vmatpush1.bf16.msra.mxu0 %v502
    %545 = vmatprep.subr.bf16.mxu0 0
    %546 = vmatpush1.bf16.msra.mxu0 %v503
    %547 = vmatprep.subr.bf16.mxu0 0
    %548 = vmatpush1.bf16.msra.mxu0 %v504
    %549 = vmatprep.subr.bf16.mxu0 0
    %550 = vmatpush1.bf16.msra.mxu0 %v505
    %551 = vmatprep.subr.bf16.mxu0 0
    %552 = vmatpush1.bf16.msra.mxu0 %v506
    %553 = vmatprep.subr.bf16.mxu0 0
    %554 = vmatpush1.bf16.msra.mxu0 %v507
    %555 = vmatprep.subr.bf16.mxu0 0
    %556 = vmatpush1.bf16.msra.mxu0 %v508
    %557 = vmatprep.mubr.bf16.mxu0 %v389
    %558 = vmatmul.mubr.bf16.gmra.mrb[0].mxu0 %v388
    %v559 = vpop.f32.mrb[0].mxu0
    %v560 = vadd.f32 %v427, %v559
    %v561 = vpop.f32.mrb[0].mxu0
    %v562 = vpop.f32.mrb[0].mxu0
    %v563 = vpop.f32.mrb[0].mxu0
    %564 = vdwg.mxu0
    %565 = vst [vmem:[%s7] sm:$0xff] %v560
    // Predicated region
    $region42: #{actor_critic_forward.1} parent=1 // pred_check
      _
    $region43: #{actor_critic_forward.1} parent=1 // pred_check_branch
      %567 = sbr.rel (0) target = $region45
    $region44: #{actor_critic_forward.1} parent=1 // pred_region
      _
    $region45: #{actor_critic_forward.1} parent=1 // pred_fallthru
      _
    // Predicated region
    $region46: #{actor_critic_forward.1} parent=1 // pred_check
      _
    $region47: #{actor_critic_forward.1} parent=1 // pred_check_branch
      %569 = sbr.rel (0) target = $region49
    $region48: #{actor_critic_forward.1} parent=1 // pred_region
      _
    $region49: #{actor_critic_forward.1} parent=1 // pred_fallthru
      _
    %570 = vsyncpa [#allocation3], 1
    %571 = vsyncpa [#allocation5], 1

</llo_original>
